<compile_context>
chip_gen: v7x
topology: tpu7x:2x2x1
jax: 0.10.0
libtpu: 0.0.40
codegen_flags: <defaults>
</compile_context>

<pallas_src>
import functools

import jax
import jax.numpy as jnp
from jax.experimental import pallas as pl
from jax.experimental.pallas import tpu as pltpu


def _round_up(x, m):
    return ((x + m - 1) // m) * m


def mlp_kernel(x_ref, w1_ref, b1_ref, w2_ref, b2_ref, w3_ref, b3_ref,
               w4_ref, b4_ref, o_ref):
    """One batch tile of the 4-layer MLP.

    x_ref:  (TM, in)   caller dtype (cast to bf16 in-kernel)
    w*_ref: (in, out)  bf16, pre-transposed to matmul layout (VMEM-resident)
    b*_ref: (1, out)   f32, row-broadcast bias (VMEM-resident)
    o_ref:  (TM, out)  caller dtype
    All dots are standard-orientation bf16 matmuls with f32 accumulation.
    """
    h = x_ref[...].astype(jnp.bfloat16)
    h = jnp.dot(h, w1_ref[...], preferred_element_type=jnp.float32) + b1_ref[...]
    h = jnp.maximum(h, 0.0)
    h = jnp.dot(h.astype(jnp.bfloat16), w2_ref[...],
                preferred_element_type=jnp.float32) + b2_ref[...]
    h = jnp.maximum(h, 0.0)
    h = jnp.dot(h.astype(jnp.bfloat16), w3_ref[...],
                preferred_element_type=jnp.float32) + b3_ref[...]
    h = jnp.maximum(h, 0.0)
    y = jnp.dot(h.astype(jnp.bfloat16), w4_ref[...],
                preferred_element_type=jnp.float32) + b4_ref[...]
    o_ref[...] = y.astype(o_ref.dtype)


@functools.partial(jax.jit, static_argnames=("tm",))
def fully_connected_forward(x, params, tm=2048):
    """x: (B, input_size). params: PyTorch-layout f32 weights (out,in), biases (out,)."""
    B, in_size = x.shape
    w1, b1 = params["w1"], params["b1"]
    w2, b2 = params["w2"], params["b2"]
    w3, b3 = params["w3"], params["b3"]
    w4, b4 = params["w4"], params["b4"]
    out_size = w4.shape[0]

    # Kernel-layout parameters: bf16 (in, out) weights, f32 (1, out) biases.
    # Master weights stay f32 in `params`; these casts/transposes are tiny.
    w1t, w2t, w3t, w4t = (w.T.astype(jnp.bfloat16) for w in (w1, w2, w3, w4))
    b1r, b2r, b3r, b4r = (b.reshape(1, -1).astype(jnp.float32)
                          for b in (b1, b2, b3, b4))

    # ---- batch-tile selection -------------------------------------------
    # Double-buffered f32 input+output tiles must fit a conservative VMEM
    # budget (safe under every chip's default scoped-VMEM limit).
    vmem_budget = 8 * 1024 * 1024
    row_bytes = 2 * 4 * (in_size + out_size)
    cap = max(128, min(tm, (vmem_budget // row_bytes) // 128 * 128))
    if B <= min(512, cap):
        tile_m = B                               # one exact tile (full-dim block)
        n_tiles = 1
    else:
        n_tiles = max(2, pl.cdiv(B, cap))        # >= 2 tiles -> both TCs on v7x
        tile_m = min(cap, _round_up(pl.cdiv(B, n_tiles), 128))
        n_tiles = pl.cdiv(B, tile_m)             # last tile may be ragged (masked)

    resident = lambda a: pl.BlockSpec(a.shape, lambda i: (0,) * a.ndim)

    return pl.pallas_call(
        mlp_kernel,
        out_shape=jax.ShapeDtypeStruct((B, out_size), x.dtype),
        grid=(n_tiles,),
        in_specs=[
            pl.BlockSpec((tile_m, in_size), lambda i: (i, 0)),
            resident(w1t), resident(b1r),
            resident(w2t), resident(b2r),
            resident(w3t), resident(b3r),
            resident(w4t), resident(b4r),
        ],
        out_specs=pl.BlockSpec((tile_m, out_size), lambda i: (i, 0)),
        compiler_params=pltpu.CompilerParams(
            dimension_semantics=("parallel",)),   # megacore sharding on v7x
    )(x, w1t, b1r, w2t, b2r, w3t, b3r, w4t, b4r)


def xavier_uniform(key, fan_out, fan_in):
    # PyTorch layout (out_features, in_features), f32 master weights.
    bound = jnp.sqrt(6.0 / (fan_in + fan_out))
    return jax.random.uniform(key, (fan_out, fan_in), jnp.float32, -bound, bound)


def linear_bias(key, fan_in, fan_out):
    # PyTorch nn.Linear default bias init: U(-1/sqrt(fan_in), 1/sqrt(fan_in)).
    bound = 1.0 / jnp.sqrt(jnp.float32(fan_in))
    return jax.random.uniform(key, (fan_out,), jnp.float32, -bound, bound)


def init_params(key, input_size, output_size):
    ks = jax.random.split(key, 8)
    return {
        "w1": xavier_uniform(ks[0], 16, input_size),
        "b1": linear_bias(ks[1], input_size, 16),
        "w2": xavier_uniform(ks[2], 16, 16),
        "b2": linear_bias(ks[3], 16, 16),
        "w3": xavier_uniform(ks[4], 16, 16),
        "b3": linear_bias(ks[5], 16, 16),
        "w4": xavier_uniform(ks[6], output_size, 16),
        "b4": linear_bias(ks[7], 16, output_size),
    }


def reference_forward(x, p):
    # Pure-JAX reference with the same bf16-multiply / f32-accumulate recipe.
    def layer(h, w, b, relu=True):
        y = jnp.dot(h.astype(jnp.bfloat16), w.astype(jnp.bfloat16).T,
                    preferred_element_type=jnp.float32) + b
        return jnp.maximum(y, 0.0) if relu else y

    h = layer(x, p["w1"], p["b1"])
    h = layer(h, p["w2"], p["b2"])
    h = layer(h, p["w3"], p["b3"])
    return layer(h, p["w4"], p["b4"], relu=False)


if __name__ == "__main__":
    key = jax.random.PRNGKey(0)
    k_x, k_p = jax.random.split(key)

    # CartPole-style DQN shapes: obs dim 4, 2 actions, minibatch of 32.
    batch, input_size, output_size = 32, 4, 2
    x = jax.random.normal(k_x, (batch, input_size), jnp.float32)
    params = init_params(k_p, input_size, output_size)

    out = jax.block_until_ready(fully_connected_forward(x, params))
    ref = reference_forward(x, params)

    assert out.shape == (batch, output_size)
    assert jnp.allclose(out, ref, atol=1e-3, rtol=1e-3), (out, ref)
    print("KERNEL_OK")
</pallas_src>

<mosaic_0001>
module attributes {stable_mosaic.version = 11 : i64} {
  func.func @mlp_kernel(%arg0: i32, %arg1: memref<32x4xf32, #tpu.memory_space<vmem>>, %arg2: memref<4x16xbf16, #tpu.memory_space<vmem>>, %arg3: memref<1x16xf32, #tpu.memory_space<vmem>>, %arg4: memref<16x16xbf16, #tpu.memory_space<vmem>>, %arg5: memref<1x16xf32, #tpu.memory_space<vmem>>, %arg6: memref<16x16xbf16, #tpu.memory_space<vmem>>, %arg7: memref<1x16xf32, #tpu.memory_space<vmem>>, %arg8: memref<16x2xbf16, #tpu.memory_space<vmem>>, %arg9: memref<1x2xf32, #tpu.memory_space<vmem>>, %arg10: memref<32x2xf32, #tpu.memory_space<vmem>>) attributes {dimension_semantics = [#tpu.dimension_semantics<parallel>], iteration_bounds = array<i64: 1>, scalar_prefetch = 0 : i64, scratch_operands = 0 : i64, tpu.core_type = #tpu.core_type<tc>, window_params = [{transform_indices = @transform_0, window_bounds = array<i64: 32, 4>}, {pipeline_mode = #tpu.pipeline_mode<synchronous>, transform_indices = @transform_1, window_bounds = array<i64: 4, 16>}, {pipeline_mode = #tpu.pipeline_mode<synchronous>, transform_indices = @transform_2, window_bounds = array<i64: 1, 16>}, {pipeline_mode = #tpu.pipeline_mode<synchronous>, transform_indices = @transform_3, window_bounds = array<i64: 16, 16>}, {pipeline_mode = #tpu.pipeline_mode<synchronous>, transform_indices = @transform_4, window_bounds = array<i64: 1, 16>}, {pipeline_mode = #tpu.pipeline_mode<synchronous>, transform_indices = @transform_5, window_bounds = array<i64: 16, 16>}, {pipeline_mode = #tpu.pipeline_mode<synchronous>, transform_indices = @transform_6, window_bounds = array<i64: 1, 16>}, {pipeline_mode = #tpu.pipeline_mode<synchronous>, transform_indices = @transform_7, window_bounds = array<i64: 16, 2>}, {pipeline_mode = #tpu.pipeline_mode<synchronous>, transform_indices = @transform_8, window_bounds = array<i64: 1, 2>}, {transform_indices = @transform_9, window_bounds = array<i64: 32, 2>}]} {
    %c0 = arith.constant 0 : index
    %c0_0 = arith.constant 0 : index
    %0 = vector.load %arg1[%c0, %c0_0] : memref<32x4xf32, #tpu.memory_space<vmem>>, vector<32x4xf32>
    %1 = arith.truncf %0 : vector<32x4xf32> to vector<32x4xbf16>
    %c0_1 = arith.constant 0 : index
    %c0_2 = arith.constant 0 : index
    %2 = vector.load %arg2[%c0_1, %c0_2] : memref<4x16xbf16, #tpu.memory_space<vmem>>, vector<4x16xbf16>
    %cst = arith.constant dense<0.000000e+00> : vector<32x16xf32>
    %3 = tpu.matmul %1, %2, %cst {dimension_numbers = #tpu.dot_dimension_numbers<[1], [0], [0], [1], [0, 0, 1, 1], [], []>} : vector<32x4xbf16>, vector<4x16xbf16>, vector<32x16xf32> -> vector<32x16xf32>
    %c0_3 = arith.constant 0 : index
    %c0_4 = arith.constant 0 : index
    %4 = vector.load %arg3[%c0_3, %c0_4] : memref<1x16xf32, #tpu.memory_space<vmem>>, vector<1x16xf32>
    %5 = vector.broadcast %4 : vector<1x16xf32> to vector<32x16xf32>
    %6 = arith.addf %3, %5 : vector<32x16xf32>
    %cst_5 = arith.constant 0.000000e+00 : f32
    %7 = vector.broadcast %cst_5 : f32 to vector<32x16xf32>
    %8 = arith.maximumf %6, %7 : vector<32x16xf32>
    %9 = arith.truncf %8 : vector<32x16xf32> to vector<32x16xbf16>
    %c0_6 = arith.constant 0 : index
    %c0_7 = arith.constant 0 : index
    %10 = vector.load %arg4[%c0_6, %c0_7] : memref<16x16xbf16, #tpu.memory_space<vmem>>, vector<16x16xbf16>
    %cst_8 = arith.constant dense<0.000000e+00> : vector<32x16xf32>
    %11 = tpu.matmul %9, %10, %cst_8 {dimension_numbers = #tpu.dot_dimension_numbers<[1], [0], [0], [1], [0, 0, 1, 1], [], []>} : vector<32x16xbf16>, vector<16x16xbf16>, vector<32x16xf32> -> vector<32x16xf32>
    %c0_9 = arith.constant 0 : index
    %c0_10 = arith.constant 0 : index
    %12 = vector.load %arg5[%c0_9, %c0_10] : memref<1x16xf32, #tpu.memory_space<vmem>>, vector<1x16xf32>
    %13 = vector.broadcast %12 : vector<1x16xf32> to vector<32x16xf32>
    %14 = arith.addf %11, %13 : vector<32x16xf32>
    %cst_11 = arith.constant 0.000000e+00 : f32
    %15 = vector.broadcast %cst_11 : f32 to vector<32x16xf32>
    %16 = arith.maximumf %14, %15 : vector<32x16xf32>
    %17 = arith.truncf %16 : vector<32x16xf32> to vector<32x16xbf16>
    %c0_12 = arith.constant 0 : index
    %c0_13 = arith.constant 0 : index
    %18 = vector.load %arg6[%c0_12, %c0_13] : memref<16x16xbf16, #tpu.memory_space<vmem>>, vector<16x16xbf16>
    %cst_14 = arith.constant dense<0.000000e+00> : vector<32x16xf32>
    %19 = tpu.matmul %17, %18, %cst_14 {dimension_numbers = #tpu.dot_dimension_numbers<[1], [0], [0], [1], [0, 0, 1, 1], [], []>} : vector<32x16xbf16>, vector<16x16xbf16>, vector<32x16xf32> -> vector<32x16xf32>
    %c0_15 = arith.constant 0 : index
    %c0_16 = arith.constant 0 : index
    %20 = vector.load %arg7[%c0_15, %c0_16] : memref<1x16xf32, #tpu.memory_space<vmem>>, vector<1x16xf32>
    %21 = vector.broadcast %20 : vector<1x16xf32> to vector<32x16xf32>
    %22 = arith.addf %19, %21 : vector<32x16xf32>
    %cst_17 = arith.constant 0.000000e+00 : f32
    %23 = vector.broadcast %cst_17 : f32 to vector<32x16xf32>
    %24 = arith.maximumf %22, %23 : vector<32x16xf32>
    %25 = arith.truncf %24 : vector<32x16xf32> to vector<32x16xbf16>
    %c0_18 = arith.constant 0 : index
    %c0_19 = arith.constant 0 : index
    %26 = vector.load %arg8[%c0_18, %c0_19] : memref<16x2xbf16, #tpu.memory_space<vmem>>, vector<16x2xbf16>
    %cst_20 = arith.constant dense<0.000000e+00> : vector<32x2xf32>
    %27 = tpu.matmul %25, %26, %cst_20 {dimension_numbers = #tpu.dot_dimension_numbers<[1], [0], [0], [1], [0, 0, 1, 1], [], []>} : vector<32x16xbf16>, vector<16x2xbf16>, vector<32x2xf32> -> vector<32x2xf32>
    %c0_21 = arith.constant 0 : index
    %c0_22 = arith.constant 0 : index
    %28 = vector.load %arg9[%c0_21, %c0_22] : memref<1x2xf32, #tpu.memory_space<vmem>>, vector<1x2xf32>
    %29 = vector.broadcast %28 : vector<1x2xf32> to vector<32x2xf32>
    %30 = arith.addf %27, %29 : vector<32x2xf32>
    %c0_23 = arith.constant 0 : index
    %c0_24 = arith.constant 0 : index
    %31 = vector.load %arg10[%c0_23, %c0_24] : memref<32x2xf32, #tpu.memory_space<vmem>>, vector<32x2xf32>
    tpu.vector_store %arg10[%c0_23, %c0_24], %30 {strides = array<i32>} : memref<32x2xf32, #tpu.memory_space<vmem>>, vector<32x2xf32>,
    return
  }
  func.func @transform_0(%arg0: i32) -> (i32, i32) {
    %c0_i32 = arith.constant 0 : i32
    %c0_i32_0 = arith.constant 0 : i32
    return %arg0, %c0_i32 : i32, i32
  }
  func.func @transform_1(%arg0: i32) -> (i32, i32) {
    %c0_i32 = arith.constant 0 : i32
    %c0_i32_0 = arith.constant 0 : i32
    %c0_i32_1 = arith.constant 0 : i32
    return %c0_i32, %c0_i32_0 : i32, i32
  }
  func.func @transform_2(%arg0: i32) -> (i32, i32) {
    %c0_i32 = arith.constant 0 : i32
    %c0_i32_0 = arith.constant 0 : i32
    %c0_i32_1 = arith.constant 0 : i32
    return %c0_i32, %c0_i32_0 : i32, i32
  }
  func.func @transform_3(%arg0: i32) -> (i32, i32) {
    %c0_i32 = arith.constant 0 : i32
    %c0_i32_0 = arith.constant 0 : i32
    %c0_i32_1 = arith.constant 0 : i32
    return %c0_i32, %c0_i32_0 : i32, i32
  }
  func.func @transform_4(%arg0: i32) -> (i32, i32) {
    %c0_i32 = arith.constant 0 : i32
    %c0_i32_0 = arith.constant 0 : i32
    %c0_i32_1 = arith.constant 0 : i32
    return %c0_i32, %c0_i32_0 : i32, i32
  }
  func.func @transform_5(%arg0: i32) -> (i32, i32) {
    %c0_i32 = arith.constant 0 : i32
    %c0_i32_0 = arith.constant 0 : i32
    %c0_i32_1 = arith.constant 0 : i32
    return %c0_i32, %c0_i32_0 : i32, i32
  }
  func.func @transform_6(%arg0: i32) -> (i32, i32) {
    %c0_i32 = arith.constant 0 : i32
    %c0_i32_0 = arith.constant 0 : i32
    %c0_i32_1 = arith.constant 0 : i32
    return %c0_i32, %c0_i32_0 : i32, i32
  }
  func.func @transform_7(%arg0: i32) -> (i32, i32) {
    %c0_i32 = arith.constant 0 : i32
    %c0_i32_0 = arith.constant 0 : i32
    %c0_i32_1 = arith.constant 0 : i32
    return %c0_i32, %c0_i32_0 : i32, i32
  }
  func.func @transform_8(%arg0: i32) -> (i32, i32) {
    %c0_i32 = arith.constant 0 : i32
    %c0_i32_0 = arith.constant 0 : i32
    %c0_i32_1 = arith.constant 0 : i32
    return %c0_i32, %c0_i32_0 : i32, i32
  }
  func.func @transform_9(%arg0: i32) -> (i32, i32) {
    %c0_i32 = arith.constant 0 : i32
    %c0_i32_0 = arith.constant 0 : i32
    return %arg0, %c0_i32 : i32, i32
  }
}

</mosaic_0001>

<llo_original>
// kernel: fully_connected_forward.1
$region0: #{fully_connected_forward.1}
  #allocation0 [shape = 'u32[]', space=smem, size = 0x4, offset = 0x4, fixed_abs, tag = 'smem constant byte address 0x4 - core index']
  #allocation1 [shape = 'u32[144,128]{1,0:T(1,128)}', space=vmem, size = 0x12000, scoped, tag = 'internal scratch']
  %s0 = inlined_call_operand.vmem [shape: f32[32,4], index: 0, kind: input, shape index: {}]
  %s1 = inlined_call_operand.vmem [shape: bf16[4,16], index: 1, kind: input, shape index: {}]
  %s2 = inlined_call_operand.vmem [shape: f32[1,16], index: 2, kind: input, shape index: {}]
  %s3 = inlined_call_operand.vmem [shape: bf16[16,16], index: 3, kind: input, shape index: {}]
  %s4 = inlined_call_operand.vmem [shape: f32[1,16], index: 4, kind: input, shape index: {}]
  %s5 = inlined_call_operand.vmem [shape: bf16[16,16], index: 5, kind: input, shape index: {}]
  %s6 = inlined_call_operand.vmem [shape: f32[1,16], index: 6, kind: input, shape index: {}]
  %s7 = inlined_call_operand.vmem [shape: bf16[16,2], index: 7, kind: input, shape index: {}]
  %s8 = inlined_call_operand.vmem [shape: f32[1,2], index: 8, kind: input, shape index: {}]
  %s9 = inlined_call_operand.vmem [shape: f32[32,2], index: 9, kind: output, shape index: {}]
  %s10 = sld [smem:[#allocation0]]
  $region46: #{fully_connected_forward.1} parent=0
    _
  %s12 = ssub.s32 1, %s10
  %s13 = scalar_select 0, %s12, %s10
  // Predicated region
  $region2: #{fully_connected_forward.1} parent=0 // pred_check
    _
  $region3: #{fully_connected_forward.1} parent=0 // pred_check_branch
    %15 = sbr.rel (0) target = $region5
  $region4: #{fully_connected_forward.1} parent=0 // pred_region
    _
  $region5: #{fully_connected_forward.1} parent=0 // pred_fallthru
    _
  // Predicated region
  $region6: #{fully_connected_forward.1} parent=0 // pred_check
    _
  $region7: #{fully_connected_forward.1} parent=0 // pred_check_branch
    %17 = sbr.rel (0) target = $region9
  $region8: #{fully_connected_forward.1} parent=0 // pred_region
    _
  $region9: #{fully_connected_forward.1} parent=0 // pred_fallthru
    _
  // Predicated region
  $region10: #{fully_connected_forward.1} parent=0 // pred_check
    _
  $region11: #{fully_connected_forward.1} parent=0 // pred_check_branch
    %19 = sbr.rel (0) target = $region13
  $region12: #{fully_connected_forward.1} parent=0 // pred_region
    _
  $region13: #{fully_connected_forward.1} parent=0 // pred_fallthru
    _
  // Predicated region
  $region14: #{fully_connected_forward.1} parent=0 // pred_check
    _
  $region15: #{fully_connected_forward.1} parent=0 // pred_check_branch
    %21 = sbr.rel (0) target = $region17
  $region16: #{fully_connected_forward.1} parent=0 // pred_region
    _
  $region17: #{fully_connected_forward.1} parent=0 // pred_fallthru
    _
  // Predicated region
  $region18: #{fully_connected_forward.1} parent=0 // pred_check
    _
  $region19: #{fully_connected_forward.1} parent=0 // pred_check_branch
    %23 = sbr.rel (0) target = $region21
  $region20: #{fully_connected_forward.1} parent=0 // pred_region
    _
  $region21: #{fully_connected_forward.1} parent=0 // pred_fallthru
    _
  // Predicated region
  $region22: #{fully_connected_forward.1} parent=0 // pred_check
    _
  $region23: #{fully_connected_forward.1} parent=0 // pred_check_branch
    %25 = sbr.rel (0) target = $region25
  $region24: #{fully_connected_forward.1} parent=0 // pred_region
    _
  $region25: #{fully_connected_forward.1} parent=0 // pred_fallthru
    _
  // Predicated region
  $region26: #{fully_connected_forward.1} parent=0 // pred_check
    _
  $region27: #{fully_connected_forward.1} parent=0 // pred_check_branch
    %27 = sbr.rel (0) target = $region29
  $region28: #{fully_connected_forward.1} parent=0 // pred_region
    _
  $region29: #{fully_connected_forward.1} parent=0 // pred_fallthru
    _
  // Predicated region
  $region30: #{fully_connected_forward.1} parent=0 // pred_check
    _
  $region31: #{fully_connected_forward.1} parent=0 // pred_check_branch
    %29 = sbr.rel (0) target = $region33
  $region32: #{fully_connected_forward.1} parent=0 // pred_region
    _
  $region33: #{fully_connected_forward.1} parent=0 // pred_fallthru
    _
  // Predicated region
  $region34: #{fully_connected_forward.1} parent=0 // pred_check
    _
  $region35: #{fully_connected_forward.1} parent=0 // pred_check_branch
    %31 = sbr.rel (0) target = $region37
  $region36: #{fully_connected_forward.1} parent=0 // pred_region
    _
  $region37: #{fully_connected_forward.1} parent=0 // pred_fallthru
    _
  %v33 = vld [vmem:[%s0] sm:$0xff]
  %v34 = vld [vmem:[%s0 + $0x8] sm:$0xff]
  %v35 = vld [vmem:[%s0 + $0x10] sm:$0xff]
  %v36 = vld [vmem:[%s0 + $0x18] sm:$0xff]
  %v37 = vpack.c.bf16 %v34, %v33
  %v38 = vpack.c.bf16 %v36, %v35
  %v39 = vld [vmem:[%s1] sm:$0x3]
  %v40 = vld [vmem:[%s2] sm:$0x1]
  %v42 = vlaneseq
  %v43 = vshrl.u32 %v42, 7
  %v44 = vsub.s32 0, %v43
  %v45 = vrot.slane %v40, %v44
  %vm47 = vcmask 31744
  %v49 = vsel %vm47, %v37, 0
  %v52 = vsel %vm47, %v38, 0
  %vm54 = vcmask 1041408
  %v56 = vsel %vm54, %v39, 0
  %58 = vmatprep.subr.bf16.mxu0 0
  %59 = vmatpush1.bf16.msra.mxu0 %v56
  %60 = vmatprep.subr.bf16.mxu0 0
  %61 = vmatpush1.bf16.msra.mxu0 0
  %62 = vmatprep.subr.bf16.mxu0 0
  %63 = vmatpush1.bf16.msra.mxu0 0
  %64 = vmatprep.subr.bf16.mxu0 0
  %65 = vmatpush1.bf16.msra.mxu0 0
  %66 = vmatprep.subr.bf16.mxu0 0
  %67 = vmatpush1.bf16.msra.mxu0 0
  %68 = vmatprep.subr.bf16.mxu0 0
  %69 = vmatpush1.bf16.msra.mxu0 0
  %70 = vmatprep.subr.bf16.mxu0 0
  %71 = vmatpush1.bf16.msra.mxu0 0
  %72 = vmatprep.subr.bf16.mxu0 0
  %73 = vmatpush1.bf16.msra.mxu0 0
  %74 = vmatprep.subr.bf16.mxu0 0
  %75 = vmatpush1.bf16.msra.mxu0 0
  %76 = vmatprep.subr.bf16.mxu0 0
  %77 = vmatpush1.bf16.msra.mxu0 0
  %78 = vmatprep.subr.bf16.mxu0 0
  %79 = vmatpush1.bf16.msra.mxu0 0
  %80 = vmatprep.subr.bf16.mxu0 0
  %81 = vmatpush1.bf16.msra.mxu0 0
  %82 = vmatprep.subr.bf16.mxu0 0
  %83 = vmatpush1.bf16.msra.mxu0 0
  %84 = vmatprep.subr.bf16.mxu0 0
  %85 = vmatpush1.bf16.msra.mxu0 0
  %86 = vmatprep.subr.bf16.mxu0 0
  %87 = vmatpush1.bf16.msra.mxu0 0
  %88 = vmatprep.subr.bf16.mxu0 0
  %89 = vmatpush1.bf16.msra.mxu0 0
  %90 = vmatprep.mubr.bf16.mxu0 0
  %91 = vmatmul.mubr.bf16.gmra.mrb[0].mxu0 %v49
  %v92 = vpop.f32.mrb[0].mxu0
  %v93 = vadd.f32 %v45, %v92
  %v94 = vpop.f32.mrb[0].mxu0
  %v95 = vpop.f32.mrb[0].mxu0
  %v96 = vadd.f32 %v45, %v95
  %v97 = vpop.f32.mrb[0].mxu0
  %98 = vmatprep.mubr.bf16.mxu0 0
  %99 = vmatmul.mubr.bf16.gmra.mrb[0].mxu0 %v52
  %v100 = vpop.f32.mrb[0].mxu0
  %v101 = vadd.f32 %v45, %v100
  %v102 = vpop.f32.mrb[0].mxu0
  %v103 = vpop.f32.mrb[0].mxu0
  %v104 = vadd.f32 %v45, %v103
  %v105 = vpop.f32.mrb[0].mxu0
  %106 = vdwg.mxu0
  %v107 = vmax.f32 %v93, 0.0
  %v108 = vmax.f32 %v96, 0.0
  %v109 = vmax.f32 %v101, 0.0
  %v110 = vmax.f32 %v104, 0.0
  %v111 = vpack.c.bf16 %v108, %v107
  %v112 = vpack.c.bf16 %v110, %v109
  %v113 = vld [vmem:[%s3] sm:$0xf]
  %v114 = vld [vmem:[%s3 + $0x4] sm:$0xf]
  %v115 = vld [vmem:[%s4] sm:$0x1]
  %v117 = vlaneseq
  %v118 = vshrl.u32 %v117, 7
  %v119 = vsub.s32 0, %v118
  %v120 = vrot.slane %v115, %v119
  %v124 = vunpack.c.l.b16 %v113
  %v125 = vunpack.c.l.b16 %v114
  %v126 = vpack.c.b16 %v125, %v124
  %vm128 = vcmask 130048
  %v130 = vsel %vm128, %v111, 0
  %v133 = vsel %vm128, %v112, 0
  %135 = vmatprep.subr.bf16.mxu0 0
  %136 = vmatpush1.bf16.msra.mxu0 %v126
  %137 = vmatprep.subr.bf16.mxu0 0
  %138 = vmatpush1.bf16.msra.mxu0 0
  %139 = vmatprep.subr.bf16.mxu0 0
  %140 = vmatpush1.bf16.msra.mxu0 0
  %141 = vmatprep.subr.bf16.mxu0 0
  %142 = vmatpush1.bf16.msra.mxu0 0
  %143 = vmatprep.subr.bf16.mxu0 0
  %144 = vmatpush1.bf16.msra.mxu0 0
  %145 = vmatprep.subr.bf16.mxu0 0
  %146 = vmatpush1.bf16.msra.mxu0 0
  %147 = vmatprep.subr.bf16.mxu0 0
  %148 = vmatpush1.bf16.msra.mxu0 0
  %149 = vmatprep.subr.bf16.mxu0 0
  %150 = vmatpush1.bf16.msra.mxu0 0
  %151 = vmatprep.subr.bf16.mxu0 0
  %152 = vmatpush1.bf16.msra.mxu0 0
  %153 = vmatprep.subr.bf16.mxu0 0
  %154 = vmatpush1.bf16.msra.mxu0 0
  %155 = vmatprep.subr.bf16.mxu0 0
  %156 = vmatpush1.bf16.msra.mxu0 0
  %157 = vmatprep.subr.bf16.mxu0 0
  %158 = vmatpush1.bf16.msra.mxu0 0
  %159 = vmatprep.subr.bf16.mxu0 0
  %160 = vmatpush1.bf16.msra.mxu0 0
  %161 = vmatprep.subr.bf16.mxu0 0
  %162 = vmatpush1.bf16.msra.mxu0 0
  %163 = vmatprep.subr.bf16.mxu0 0
  %164 = vmatpush1.bf16.msra.mxu0 0
  %165 = vmatprep.subr.bf16.mxu0 0
  %166 = vmatpush1.bf16.msra.mxu0 0
  %167 = vmatprep.mubr.bf16.mxu0 0
  %168 = vmatmul.mubr.bf16.gmra.mrb[0].mxu0 %v130
  %v169 = vpop.f32.mrb[0].mxu0
  %v170 = vadd.f32 %v120, %v169
  %v171 = vpop.f32.mrb[0].mxu0
  %v172 = vpop.f32.mrb[0].mxu0
  %v173 = vadd.f32 %v120, %v172
  %v174 = vpop.f32.mrb[0].mxu0
  %175 = vmatprep.mubr.bf16.mxu0 0
  %176 = vmatmul.mubr.bf16.gmra.mrb[0].mxu0 %v133
  %v177 = vpop.f32.mrb[0].mxu0
  %v178 = vadd.f32 %v120, %v177
  %v179 = vpop.f32.mrb[0].mxu0
  %v180 = vpop.f32.mrb[0].mxu0
  %v181 = vadd.f32 %v120, %v180
  %v182 = vpop.f32.mrb[0].mxu0
  %183 = vdwg.mxu0
  %v184 = vmax.f32 %v170, 0.0
  %v185 = vmax.f32 %v173, 0.0
  %v186 = vmax.f32 %v178, 0.0
  %v187 = vmax.f32 %v181, 0.0
  %v188 = vpack.c.bf16 %v185, %v184
  %v189 = vpack.c.bf16 %v187, %v186
  %v190 = vld [vmem:[%s5] sm:$0xf]
  %v191 = vld [vmem:[%s5 + $0x4] sm:$0xf]
  %v192 = vld [vmem:[%s6] sm:$0x1]
  %v194 = vlaneseq
  %v195 = vshrl.u32 %v194, 7
  %v196 = vsub.s32 0, %v195
  %v197 = vrot.slane %v192, %v196
  %v201 = vunpack.c.l.b16 %v190
  %v202 = vunpack.c.l.b16 %v191
  %v203 = vpack.c.b16 %v202, %v201
  %v206 = vsel %vm128, %v188, 0
  %v209 = vsel %vm128, %v189, 0
  %211 = vmatprep.subr.bf16.mxu0 0
  %212 = vmatpush1.bf16.msra.mxu0 %v203
  %213 = vmatprep.subr.bf16.mxu0 0
  %214 = vmatpush1.bf16.msra.mxu0 0
  %215 = vmatprep.subr.bf16.mxu0 0
  %216 = vmatpush1.bf16.msra.mxu0 0
  %217 = vmatprep.subr.bf16.mxu0 0
  %218 = vmatpush1.bf16.msra.mxu0 0
  %219 = vmatprep.subr.bf16.mxu0 0
  %220 = vmatpush1.bf16.msra.mxu0 0
  %221 = vmatprep.subr.bf16.mxu0 0
  %222 = vmatpush1.bf16.msra.mxu0 0
  %223 = vmatprep.subr.bf16.mxu0 0
  %224 = vmatpush1.bf16.msra.mxu0 0
  %225 = vmatprep.subr.bf16.mxu0 0
  %226 = vmatpush1.bf16.msra.mxu0 0
  %227 = vmatprep.subr.bf16.mxu0 0
  %228 = vmatpush1.bf16.msra.mxu0 0
  %229 = vmatprep.subr.bf16.mxu0 0
  %230 = vmatpush1.bf16.msra.mxu0 0
  %231 = vmatprep.subr.bf16.mxu0 0
  %232 = vmatpush1.bf16.msra.mxu0 0
  %233 = vmatprep.subr.bf16.mxu0 0
  %234 = vmatpush1.bf16.msra.mxu0 0
  %235 = vmatprep.subr.bf16.mxu0 0
  %236 = vmatpush1.bf16.msra.mxu0 0
  %237 = vmatprep.subr.bf16.mxu0 0
  %238 = vmatpush1.bf16.msra.mxu0 0
  %239 = vmatprep.subr.bf16.mxu0 0
  %240 = vmatpush1.bf16.msra.mxu0 0
  %241 = vmatprep.subr.bf16.mxu0 0
  %242 = vmatpush1.bf16.msra.mxu0 0
  %243 = vmatprep.mubr.bf16.mxu0 0
  %244 = vmatmul.mubr.bf16.gmra.mrb[0].mxu0 %v206
  %v245 = vpop.f32.mrb[0].mxu0
  %v246 = vadd.f32 %v197, %v245
  %v247 = vpop.f32.mrb[0].mxu0
  %v248 = vpop.f32.mrb[0].mxu0
  %v249 = vadd.f32 %v197, %v248
  %v250 = vpop.f32.mrb[0].mxu0
  %251 = vmatprep.mubr.bf16.mxu0 0
  %252 = vmatmul.mubr.bf16.gmra.mrb[0].mxu0 %v209
  %v253 = vpop.f32.mrb[0].mxu0
  %v254 = vadd.f32 %v197, %v253
  %v255 = vpop.f32.mrb[0].mxu0
  %v256 = vpop.f32.mrb[0].mxu0
  %v257 = vadd.f32 %v197, %v256
  %v258 = vpop.f32.mrb[0].mxu0
  %259 = vdwg.mxu0
  %v260 = vmax.f32 %v246, 0.0
  %v261 = vmax.f32 %v249, 0.0
  %v262 = vmax.f32 %v254, 0.0
  %v263 = vmax.f32 %v257, 0.0
  %v264 = vpack.c.bf16 %v261, %v260
  %v265 = vpack.c.bf16 %v263, %v262
  %v266 = vld [vmem:[%s7] sm:$0xf]
  %v267 = vld [vmem:[%s7 + $0x4] sm:$0xf]
  %v268 = vld [vmem:[%s8] sm:$0x1]
  %v270 = vlaneseq
  %v271 = vshrl.u32 %v270, 7
  %v272 = vsub.s32 0, %v271
  %v273 = vrot.slane %v268, %v272
  %v277 = vunpack.c.l.b16 %v266
  %v278 = vunpack.c.l.b16 %v267
  %v279 = vpack.c.b16 %v278, %v277
  %v282 = vsel %vm128, %v264, 0
  %v285 = vsel %vm128, %v265, 0
  %287 = vmatprep.subr.bf16.mxu0 0
  %288 = vmatpush1.bf16.msra.mxu0 %v279
  %289 = vmatprep.subr.bf16.mxu0 0
  %290 = vmatpush1.bf16.msra.mxu0 0
  %291 = vmatprep.subr.bf16.mxu0 0
  %292 = vmatpush1.bf16.msra.mxu0 0
  %293 = vmatprep.subr.bf16.mxu0 0
  %294 = vmatpush1.bf16.msra.mxu0 0
  %295 = vmatprep.subr.bf16.mxu0 0
  %296 = vmatpush1.bf16.msra.mxu0 0
  %297 = vmatprep.subr.bf16.mxu0 0
  %298 = vmatpush1.bf16.msra.mxu0 0
  %299 = vmatprep.subr.bf16.mxu0 0
  %300 = vmatpush1.bf16.msra.mxu0 0
  %301 = vmatprep.subr.bf16.mxu0 0
  %302 = vmatpush1.bf16.msra.mxu0 0
  %303 = vmatprep.subr.bf16.mxu0 0
  %304 = vmatpush1.bf16.msra.mxu0 0
  %305 = vmatprep.subr.bf16.mxu0 0
  %306 = vmatpush1.bf16.msra.mxu0 0
  %307 = vmatprep.subr.bf16.mxu0 0
  %308 = vmatpush1.bf16.msra.mxu0 0
  %309 = vmatprep.subr.bf16.mxu0 0
  %310 = vmatpush1.bf16.msra.mxu0 0
  %311 = vmatprep.subr.bf16.mxu0 0
  %312 = vmatpush1.bf16.msra.mxu0 0
  %313 = vmatprep.subr.bf16.mxu0 0
  %314 = vmatpush1.bf16.msra.mxu0 0
  %315 = vmatprep.subr.bf16.mxu0 0
  %316 = vmatpush1.bf16.msra.mxu0 0
  %317 = vmatprep.subr.bf16.mxu0 0
  %318 = vmatpush1.bf16.msra.mxu0 0
  %319 = vmatprep.mubr.bf16.mxu0 0
  %320 = vmatmul.mubr.bf16.gmra.mrb[0].mxu0 %v282
  %v321 = vpop.f32.mrb[0].mxu0
  %v322 = vadd.f32 %v273, %v321
  %v323 = vpop.f32.mrb[0].mxu0
  %v324 = vpop.f32.mrb[0].mxu0
  %v325 = vadd.f32 %v273, %v324
  %v326 = vpop.f32.mrb[0].mxu0
  %327 = vmatprep.mubr.bf16.mxu0 0
  %328 = vmatmul.mubr.bf16.gmra.mrb[0].mxu0 %v285
  %v329 = vpop.f32.mrb[0].mxu0
  %v330 = vadd.f32 %v273, %v329
  %v331 = vpop.f32.mrb[0].mxu0
  %v332 = vpop.f32.mrb[0].mxu0
  %v333 = vadd.f32 %v273, %v332
  %v334 = vpop.f32.mrb[0].mxu0
  %335 = vdwg.mxu0
  %vm336 = vcmask 15360
  %337 = vst.msk [vmem:[%s9] sm:$0xff] %vm336, %v322
  %338 = vst.msk [vmem:[%s9 + $0x8] sm:$0xff] %vm336, %v325
  %339 = vst.msk [vmem:[%s9 + $0x10] sm:$0xff] %vm336, %v330
  %340 = vst.msk [vmem:[%s9 + $0x18] sm:$0xff] %vm336, %v333
  // Predicated region
  $region38: #{fully_connected_forward.1} parent=0 // pred_check
    _
  $region39: #{fully_connected_forward.1} parent=0 // pred_check_branch
    %342 = sbr.rel (0) target = $region41
  $region40: #{fully_connected_forward.1} parent=0 // pred_region
    _
  $region41: #{fully_connected_forward.1} parent=0 // pred_fallthru
    _
  // Predicated region
  $region42: #{fully_connected_forward.1} parent=0 // pred_check
    _
  $region43: #{fully_connected_forward.1} parent=0 // pred_check_branch
    %344 = sbr.rel (0) target = $region45
  $region44: #{fully_connected_forward.1} parent=0 // pred_region
    _
  $region45: #{fully_connected_forward.1} parent=0 // pred_fallthru
    _

</llo_original>
